<compile_context>
chip_gen: v7x
topology: tpu7x:2x2x1
jax: 0.10.0
libtpu: 0.0.40
codegen_flags: <defaults>
</compile_context>

<pallas_src>
import sys
import jax
import jax.numpy as jnp
from jax.experimental import pallas as pl
from jax.experimental.pallas import tpu as pltpu

EPS = float(sys.float_info.epsilon)  # 2.220446049250313e-16
LANES = 128
TILE_ROWS = 4096          # 2 MiB per input per tile (f32)
SMALL_MAX_ROWS = 8192     # <= 4 MiB per input -> single VMEM block path
VMEM_LIMIT_SMALL = 48 * 1024 * 1024   # safe on v7x (64 MiB physical) and v5e/v6e
VMEM_LIMIT_TILED = 40 * 1024 * 1024


def _kl_small_kernel(x_ref, t_ref, o_ref):
    """Whole tensor in one VMEM block: sums + KL in a single pass (read once)."""
    x = x_ref[...].astype(jnp.float32)
    t = t_ref[...].astype(jnp.float32)
    r0 = 1.0 / jnp.sum(x)
    r1 = 1.0 / jnp.sum(t)
    # sum(tn * log(eps + tn/(xn+eps))) == r1 * sum(t * log(eps + (t*r1)/(x*r0+eps)))
    o_ref[0] = jnp.sum(t * jnp.log(EPS + (t * r1) / (x * r0 + EPS))) * r1


def _make_kl_fused_kernel(tile_rows, rows, need_mask):
    """Fused two-phase kernel: phase 0 -> global sums, phase 1 -> KL sum."""
    groups = tile_rows // 8

    def fold8(v):
        # (tile_rows, LANES) -> (8, LANES): pure VPU vreg adds.  The reshape
        # does not cross (8,128) tile boundaries, so it is layout-free; the
        # persistent accumulators stay a single vreg wide.
        return jnp.sum(v.reshape(groups, 8, LANES), axis=0)

    def kernel(x_ref, t_ref, o_ref, sums_ref, accx_ref, acct_ref, acckl_ref):
        phase = pl.program_id(0)
        i = pl.program_id(1)
        last = pl.num_programs(1) - 1

        x = x_ref[...].astype(jnp.float32)
        t = t_ref[...].astype(jnp.float32)
        if need_mask:
            # The last tile may extend past `rows`; those rows hold garbage.
            # Sublane-only iota (tile_rows, 1); the compare broadcasts along
            # lanes -> ~1 select per data vreg.
            rid = i * tile_rows + jax.lax.broadcasted_iota(
                jnp.int32, (tile_rows, 1), 0)
            valid = rid < rows
            x = jnp.where(valid, x, 0.0)
            t = jnp.where(valid, t, 0.0)
            # TODO(synk): on v7x gate this to the last tile only (lax.cond);
            # on v5e/v6e it is free filler under the HBM-bound slack.

        @pl.when(phase == 0)
        def _():
            @pl.when(i == 0)
            def _():
                accx_ref[...] = jnp.zeros_like(accx_ref)
                acct_ref[...] = jnp.zeros_like(acct_ref)

            # Steady state: fold the tile to one vreg, add into the vreg acc.
            accx_ref[...] += fold8(x)
            acct_ref[...] += fold8(t)

            @pl.when(i == last)
            def _():
                # One tiny cross-lane reduce per sum; store the RECIPROCALS so
                # phase 1 does no scalar divides.
                sums_ref[0] = 1.0 / jnp.sum(accx_ref[...])
                sums_ref[1] = 1.0 / jnp.sum(acct_ref[...])

        @pl.when(phase == 1)
        def _():
            @pl.when(i == 0)
            def _():
                acckl_ref[...] = jnp.zeros_like(acckl_ref)

            r0 = sums_ref[0]   # 1 / sum(x)
            r1 = sums_ref[1]   # 1 / sum(t)
            # Per element: 1 divide + 1 log on the EUP; the rest is VPU.
            # TODO(synk): on v7x replace the divide with
            #   * pl.reciprocal(x * r0 + EPS, approx=True)
            # (requires a looser tolerance vs. the exact reference).
            kl = t * jnp.log(EPS + (t * r1) / (x * r0 + EPS))
            acckl_ref[...] += fold8(kl)

            @pl.when(i == last)
            def _():
                o_ref[0] = jnp.sum(acckl_ref[...]) * r1

    return kernel


def criterion_kl3(inp, tgt):
    assert inp.shape == tgt.shape, "input.size() == target.size()"

    n = inp.size
    xf = inp.reshape(-1)
    tf = tgt.reshape(-1)
    if n % LANES != 0:
        # Small lane-pad only when unavoidable; padded zeros contribute 0.
        pad = LANES - (n % LANES)
        xf = jnp.pad(xf, (0, pad))
        tf = jnp.pad(tf, (0, pad))
    rows = (n + LANES - 1) // LANES
    xf = xf.reshape(rows, LANES)
    tf = tf.reshape(rows, LANES)

    if rows <= SMALL_MAX_ROWS:
        # Fits in VMEM: single block, each input read from HBM exactly once.
        out = pl.pallas_call(
            _kl_small_kernel,
            out_shape=jax.ShapeDtypeStruct((1,), jnp.float32),
            grid=(1,),
            in_specs=[pl.BlockSpec((rows, LANES), lambda i: (0, 0)),
                      pl.BlockSpec((rows, LANES), lambda i: (0, 0))],
            out_specs=pl.BlockSpec(memory_space=pltpu.SMEM),
            compiler_params=pltpu.CompilerParams(
                dimension_semantics=("arbitrary",),
                vmem_limit_bytes=VMEM_LIMIT_SMALL),
        )(xf, tf)
        return out[0]

    tile_rows = TILE_ROWS
    n_tiles = pl.cdiv(rows, tile_rows)
    need_mask = (rows % tile_rows) != 0
    kernel = _make_kl_fused_kernel(tile_rows, rows, need_mask)

    tile_spec = pl.BlockSpec((tile_rows, LANES), lambda p, i: (i, 0))
    out = pl.pallas_call(
        kernel,
        out_shape=jax.ShapeDtypeStruct((1,), jnp.float32),
        grid=(2, n_tiles),  # (phase, tile); phase 1 needs phase 0's sums
        in_specs=[tile_spec, tile_spec],
        out_specs=pl.BlockSpec(memory_space=pltpu.SMEM),
        scratch_shapes=[
            pltpu.SMEM((2,), jnp.float32),               # [1/sum(x), 1/sum(t)]
            pltpu.VMEM((8, LANES), jnp.float32),         # vreg acc: sum(x)
            pltpu.VMEM((8, LANES), jnp.float32),         # vreg acc: sum(t)
            pltpu.VMEM((8, LANES), jnp.float32),         # vreg acc: KL partials
        ],
        compiler_params=pltpu.CompilerParams(
            # Keep BOTH axes sequential: the accumulators depend on ordered
            # visits and phase 1 must follow phase 0.
            dimension_semantics=("arbitrary", "arbitrary"),
            vmem_limit_bytes=VMEM_LIMIT_TILED),
    )(xf, tf)
    return out[0]


def criterion_kl3_ref(inp, tgt):
    """Pure-JAX reference mirroring the PyTorch module."""
    x = inp.astype(jnp.float32)
    t = tgt.astype(jnp.float32)
    xn = x / jnp.sum(x)
    tn = t / jnp.sum(t)
    return jnp.sum(tn * jnp.log(EPS + tn / (xn + EPS)))


if __name__ == "__main__":
    key = jax.random.PRNGKey(0)
    k1, k2, k3, k4, k5, k6 = jax.random.split(key, 6)

    # Primary test: small NCHW maps (single-VMEM-block path).
    x = jax.random.uniform(k1, (2, 4, 16, 16), dtype=jnp.float32,
                           minval=0.05, maxval=1.0)
    t = jax.random.uniform(k2, (2, 4, 16, 16), dtype=jnp.float32,
                           minval=0.05, maxval=1.0)
    loss = jax.block_until_ready(criterion_kl3(x, t))
    ref = jax.block_until_ready(criterion_kl3_ref(x, t))
    assert jnp.isfinite(loss), f"non-finite loss: {loss}"
    assert jnp.allclose(loss, ref, rtol=1e-5, atol=1e-6), f"mismatch: {loss} vs {ref}"

    # Lane-pad path (n % 128 != 0), still the small path.
    x1 = jax.random.uniform(k5, (2, 4, 10, 25), dtype=jnp.float32,
                            minval=0.05, maxval=1.0)
    t1 = jax.random.uniform(k6, (2, 4, 10, 25), dtype=jnp.float32,
                            minval=0.05, maxval=1.0)
    loss1 = jax.block_until_ready(criterion_kl3(x1, t1))
    ref1 = jax.block_until_ready(criterion_kl3_ref(x1, t1))
    assert jnp.isfinite(loss1), f"non-finite loss: {loss1}"
    assert jnp.allclose(loss1, ref1, rtol=1e-5, atol=1e-6), f"mismatch: {loss1} vs {ref1}"

    # Tiled fused path: 13312 rows > SMALL_MAX_ROWS, ragged last tile (mask).
    x2 = jax.random.uniform(k3, (8, 13, 128, 128), dtype=jnp.float32,
                            minval=0.05, maxval=1.0)
    t2 = jax.random.uniform(k4, (8, 13, 128, 128), dtype=jnp.float32,
                            minval=0.05, maxval=1.0)
    loss2 = jax.block_until_ready(criterion_kl3(x2, t2))
    ref2 = jax.block_until_ready(criterion_kl3_ref(x2, t2))
    assert jnp.isfinite(loss2), f"non-finite loss: {loss2}"
    assert jnp.allclose(loss2, ref2, rtol=5e-4, atol=1e-6), f"mismatch: {loss2} vs {ref2}"

    print("KERNEL_OK")
</pallas_src>

<mosaic_0001>
module attributes {stable_mosaic.version = 11 : i64} {
  func.func @_kl_small_kernel(%arg0: i32, %arg1: memref<16x128xf32, #tpu.memory_space<vmem>>, %arg2: memref<16x128xf32, #tpu.memory_space<vmem>>, %arg3: memref<1xf32, #tpu.memory_space<smem>>) attributes {dimension_semantics = [#tpu.dimension_semantics<arbitrary>], iteration_bounds = array<i64: 1>, scalar_prefetch = 0 : i64, scratch_operands = 0 : i64, tpu.core_type = #tpu.core_type<tc>, window_params = [{pipeline_mode = #tpu.pipeline_mode<synchronous>, transform_indices = @transform_0, window_bounds = array<i64: 16, 128>}, {pipeline_mode = #tpu.pipeline_mode<synchronous>, transform_indices = @transform_1, window_bounds = array<i64: 16, 128>}, {transform_indices = @transform_2, window_bounds = array<i64: 1>}]} {
    %c0 = arith.constant 0 : index
    %c0_0 = arith.constant 0 : index
    %0 = vector.load %arg1[%c0, %c0_0] : memref<16x128xf32, #tpu.memory_space<vmem>>, vector<16x128xf32>
    %c0_1 = arith.constant 0 : index
    %c0_2 = arith.constant 0 : index
    %1 = vector.load %arg2[%c0_1, %c0_2] : memref<16x128xf32, #tpu.memory_space<vmem>>, vector<16x128xf32>
    %2 = vector.shape_cast %0 : vector<16x128xf32> to vector<1x16x128xf32>
    %cst = arith.constant dense<0.000000e+00> : vector<1xf32>
    %3 = vector.multi_reduction <add>, %2, %cst [1, 2] : vector<1x16x128xf32> to vector<1xf32>
    %4 = vector.shape_cast %3 : vector<1xf32> to vector<1x1x1xf32>
    %5 = vector.extract %4[0, 0, 0] : f32 from vector<1x1x1xf32>
    %cst_3 = arith.constant 1.000000e+00 : f32
    %6 = arith.divf %cst_3, %5 : f32
    %7 = vector.shape_cast %1 : vector<16x128xf32> to vector<1x16x128xf32>
    %cst_4 = arith.constant dense<0.000000e+00> : vector<1xf32>
    %8 = vector.multi_reduction <add>, %7, %cst_4 [1, 2] : vector<1x16x128xf32> to vector<1xf32>
    %9 = vector.shape_cast %8 : vector<1xf32> to vector<1x1x1xf32>
    %10 = vector.extract %9[0, 0, 0] : f32 from vector<1x1x1xf32>
    %cst_5 = arith.constant 1.000000e+00 : f32
    %11 = arith.divf %cst_5, %10 : f32
    %12 = vector.broadcast %11 : f32 to vector<16x128xf32>
    %13 = arith.mulf %1, %12 : vector<16x128xf32>
    %14 = vector.broadcast %6 : f32 to vector<16x128xf32>
    %15 = arith.mulf %0, %14 : vector<16x128xf32>
    %cst_6 = arith.constant 2.22044605E-16 : f32
    %16 = vector.broadcast %cst_6 : f32 to vector<16x128xf32>
    %17 = arith.addf %15, %16 : vector<16x128xf32>
    %18 = arith.divf %13, %17 : vector<16x128xf32>
    %cst_7 = arith.constant 2.22044605E-16 : f32
    %19 = vector.broadcast %cst_7 : f32 to vector<16x128xf32>
    %20 = arith.addf %19, %18 : vector<16x128xf32>
    %21 = math.log %20 : vector<16x128xf32>
    %22 = arith.mulf %1, %21 : vector<16x128xf32>
    %23 = vector.shape_cast %22 : vector<16x128xf32> to vector<1x16x128xf32>
    %cst_8 = arith.constant dense<0.000000e+00> : vector<1xf32>
    %24 = vector.multi_reduction <add>, %23, %cst_8 [1, 2] : vector<1x16x128xf32> to vector<1xf32>
    %25 = vector.shape_cast %24 : vector<1xf32> to vector<1x1x1xf32>
    %26 = vector.extract %25[0, 0, 0] : f32 from vector<1x1x1xf32>
    %27 = arith.mulf %26, %11 : f32
    %c0_9 = arith.constant 0 : index
    %28 = memref.load %arg3[%c0_9] : memref<1xf32, #tpu.memory_space<smem>>
    memref.store %27, %arg3[%c0_9] : memref<1xf32, #tpu.memory_space<smem>>
    return
  }
  func.func @transform_0(%arg0: i32) -> (i32, i32) {
    %c0_i32 = arith.constant 0 : i32
    %c0_i32_0 = arith.constant 0 : i32
    %c0_i32_1 = arith.constant 0 : i32
    return %c0_i32, %c0_i32_0 : i32, i32
  }
  func.func @transform_1(%arg0: i32) -> (i32, i32) {
    %c0_i32 = arith.constant 0 : i32
    %c0_i32_0 = arith.constant 0 : i32
    %c0_i32_1 = arith.constant 0 : i32
    return %c0_i32, %c0_i32_0 : i32, i32
  }
  func.func @transform_2(%arg0: i32) -> i32 {
    %c0_i32 = arith.constant 0 : i32
    %c0_i32_0 = arith.constant 0 : i32
    return %c0_i32 : i32
  }
}

</mosaic_0001>

<llo_original>
// kernel: tpu_custom_call.1
$region0: #{tpu_custom_call.1}
  #allocation0 [shape = 'u32[]', space=smem, size = 0x4, offset = 0x4, fixed_abs, tag = 'smem constant byte address 0x4 - core index']
  #allocation1 [shape = 'u32[144,128]{1,0:T(1,128)}', space=vmem, size = 0x12000, scoped, tag = 'internal scratch']
  %s0 = inlined_call_operand.hbm [shape: f32[16,128], index: 0, kind: input, shape index: {}]
  %s1 = inlined_call_operand.hbm [shape: f32[16,128], index: 1, kind: input, shape index: {}]
  %s2 = inlined_call_operand.hbm [shape: f32[1], index: 2, kind: output, shape index: {}]
  %s3 = sld [smem:[#allocation0]]
  $region26: #{tpu_custom_call.1} parent=0
    _
  %s5 = ssub.s32 1, %s3
  %s6 = scalar_select 0, %s5, %s3
  $region1: #{tpu_custom_call.1} parent=0
    #allocation2 [shape = 'u8[8192]{0}', space=vmem, size = 0x2000, scoped, tag = 'input window, operand 0, single buffered']
    #allocation3 [shape = 's32[1]{0}', space=sflag, size = 0x4, scoped, tag = 'scoped memory for tpu_custom_call.1']
    #allocation4 [shape = 's32[1]{0}', space=sflag, size = 0x4, scoped, tag = 'scoped memory for tpu_custom_call.1']
    #allocation5 [shape = 'u8[8192]{0}', space=vmem, size = 0x2000, scoped, tag = 'input window, operand 1, single buffered']
    #allocation6 [shape = 's32[1]{0}', space=sflag, size = 0x4, scoped, tag = 'scoped memory for tpu_custom_call.1']
    #allocation7 [shape = 'u8[512]{0}', space=smem, size = 0x200, scoped, tag = 'output window, operand 0, single buffered']
    %7 = vsyncpa [#allocation3], 0
    %8 = vsyncpa [#allocation6], 0
    %9 = vsyncpa [#allocation4], 0
    // Predicated region
    $region2: #{tpu_custom_call.1} parent=1 // pred_check
      _
    $region3: #{tpu_custom_call.1} parent=1 // pred_check_branch
      %11 = sbr.rel (0) target = $region5
    $region4: #{tpu_custom_call.1} parent=1 // pred_region
      %s13 = ssub.s32 256, 256
      %14 = vsyncadd [#allocation3], %s13
      %s15 = sshll.u32 [#allocation2], 4
      %s16 = int_to_ptr.vmem [resolvable:$true] %s15
      %21 = dma.hbm_to_vmem [thread:$0]  %s0, 256, %s16, [#allocation3], 128, 128, 8
    $region5: #{tpu_custom_call.1} parent=1 // pred_fallthru
      _
    // Predicated region
    $region6: #{tpu_custom_call.1} parent=1 // pred_check
      _
    $region7: #{tpu_custom_call.1} parent=1 // pred_check_branch
      %23 = sbr.rel (0) target = $region9
    $region8: #{tpu_custom_call.1} parent=1 // pred_region
      %s25 = ssub.s32 256, 256
      %26 = vsyncadd [#allocation6], %s25
      %s27 = sshll.u32 [#allocation5], 4
      %s28 = int_to_ptr.vmem [resolvable:$true] %s27
      %33 = dma.hbm_to_vmem [thread:$0]  %s1, 256, %s28, [#allocation6], 128, 128, 8
    $region9: #{tpu_custom_call.1} parent=1 // pred_fallthru
      _
    // Predicated region
    $region10: #{tpu_custom_call.1} parent=1 // pred_check
      _
    $region11: #{tpu_custom_call.1} parent=1 // pred_check_branch
      %35 = sbr.rel (0) target = $region13
    $region12: #{tpu_custom_call.1} parent=1 // pred_region
      %36 = dma.done [#allocation3], 256
    $region13: #{tpu_custom_call.1} parent=1 // pred_fallthru
      _
    // Predicated region
    $region14: #{tpu_custom_call.1} parent=1 // pred_check
      _
    $region15: #{tpu_custom_call.1} parent=1 // pred_check_branch
      %38 = sbr.rel (0) target = $region17
    $region16: #{tpu_custom_call.1} parent=1 // pred_region
      %39 = dma.done [#allocation6], 256
    $region17: #{tpu_custom_call.1} parent=1 // pred_fallthru
      _
    %v40 = vld [vmem:[#allocation2] sm:$0xff]
    %v41 = vld [vmem:[#allocation2 + $0x8] sm:$0xff]
    %v42 = vld [vmem:[#allocation5] sm:$0xff]
    %v43 = vld [vmem:[#allocation5 + $0x8] sm:$0xff]
    %v44 = vadd.f32 %v40, %v41
    %45 = vadd.xlane.f32.xlu0 %v44
    %v46 = vpop.xlane.xlu0 %45
    %v47 = vrot.slane %v46, 4
    %v48 = vadd.f32 %v46, %v47
    %v49 = vrot.slane %v48, 2
    %v50 = vadd.f32 %v48, %v49
    %v51 = vrot.slane %v50, 1
    %v52 = vadd.f32 %v50, %v51
    %s53 = vtos %v52
    %v54 = vstv %s53
    %v55 = vrcp.pop %v54
    %s56 = vtos %v55
    %v57 = vadd.f32 %v42, %v43
    %58 = vadd.xlane.f32.xlu0 %v57
    %v59 = vpop.xlane.xlu0 %58
    %v60 = vrot.slane %v59, 4
    %v61 = vadd.f32 %v59, %v60
    %v62 = vrot.slane %v61, 2
    %v63 = vadd.f32 %v61, %v62
    %v64 = vrot.slane %v63, 1
    %v65 = vadd.f32 %v63, %v64
    %s66 = vtos %v65
    %v67 = vstv %s66
    %v68 = vrcp.pop %v67
    %s69 = vtos %v68
    %v70 = vstv %s69
    %v71 = vmul.f32 %v42, %v70
    %v72 = vmul.f32 %v43, %v70
    %v73 = vstv %s56
    %v74 = vmul.f32 %v40, %v73
    %v75 = vmul.f32 %v41, %v73
    %v76 = vadd.f32 %v74, 2.220446e-16
    %v77 = vadd.f32 %v75, 2.220446e-16
    %v78 = vrcp.pop %v76
    %v79 = vmul.f32 %v71, %v78
    %v80 = vrcp.pop %v77
    %v81 = vmul.f32 %v72, %v80
    %v82 = vadd.f32 %v79, 2.220446e-16
    %v83 = vadd.f32 %v81, 2.220446e-16
    %v84 = vlog2.pop %v82
    %v85 = vmul.f32 %v84, 0.6931472
    %v86 = vlog2.pop %v83
    %v87 = vmul.f32 %v86, 0.6931472
    %v88 = vmul.f32 %v42, %v85
    %v89 = vmul.f32 %v43, %v87
    %v90 = vadd.f32 %v88, %v89
    %91 = vadd.xlane.f32.xlu0 %v90
    %v92 = vpop.xlane.xlu0 %91
    %v93 = vrot.slane %v92, 4
    %v94 = vadd.f32 %v92, %v93
    %v95 = vrot.slane %v94, 2
    %v96 = vadd.f32 %v94, %v95
    %v97 = vrot.slane %v96, 1
    %v98 = vadd.f32 %v96, %v97
    %s99 = vtos %v98
    %s100 = smul.f32 %s99, %s69
    %s101 = scalar_lea.smem [#allocation7], 0
    %102 = sst [smem:[%s101]] %s100
    // Predicated region
    $region18: #{tpu_custom_call.1} parent=1 // pred_check
      _
    $region19: #{tpu_custom_call.1} parent=1 // pred_check_branch
      %104 = sbr.rel (0) target = $region21
    $region20: #{tpu_custom_call.1} parent=1 // pred_region
      %s106 = ssub.s32 16, 16
      %107 = vsyncadd [#allocation4], %s106
      %110 = dma.smem_to_hbm [#allocation7], 16, %s2, [#allocation4]
    $region21: #{tpu_custom_call.1} parent=1 // pred_fallthru
      _
    // Predicated region
    $region22: #{tpu_custom_call.1} parent=1 // pred_check
      _
    $region23: #{tpu_custom_call.1} parent=1 // pred_check_branch
      %112 = sbr.rel (0) target = $region25
    $region24: #{tpu_custom_call.1} parent=1 // pred_region
      %113 = dma.done [#allocation4], 16
    $region25: #{tpu_custom_call.1} parent=1 // pred_fallthru
      _
    %114 = sfence
    %115 = vsyncpa [#allocation3], 1
    %116 = vsyncpa [#allocation6], 1
    %117 = vsyncpa [#allocation4], 1

</llo_original>
